<compile_context>
chip_gen: v5e
topology: v5e:2x2
jax: 0.10.0
libtpu: 0.0.40
codegen_flags: <defaults>
</compile_context>

<pallas_src>
import functools

import jax
import jax.numpy as jnp
from jax import lax
from jax.experimental import pallas as pl
from jax.experimental.pallas import tpu as pltpu

_NEG_BIG = -1e30     # Python float: finite "-inf" (no inf-inf NaNs, never a captured const)
_EPS_SQ = 1e-24      # F.normalize eps=1e-12, squared (used under rsqrt)

_TILE_VMEM_BUDGET = 28 * 1024 * 1024   # conservative tile budget across v5e/v6e/v7x
_VMEM_LIMIT_BYTES = 48 * 1024 * 1024   # raised scoped limit (v7x physical is 64 MiB/TC)


def _round_up(n, m):
    return ((n + m - 1) // m) * m


def _gce_kernel(x_ref, et_ref, inv_ref, bias_ref, label_ref, out_ref,
                xn_ref, m_ref, l_ref, tgt_ref,
                *, tb, tc, n_ctiles, batch, inv_batch, mask_classes, mask_rows):
    ci = pl.program_id(1)

    # ---- per-row-tile init (once per i tile; hoisted out of the C stream) ----
    @pl.when(ci == 0)
    def _():
        x = x_ref[...].astype(jnp.float32)                                   # (tb, D)
        inv = lax.rsqrt(jnp.maximum(jnp.sum(x * x, axis=-1, keepdims=True), _EPS_SQ))
        xn_ref[...] = (x * inv).astype(xn_ref.dtype)                         # F.normalize(x)
        m_ref[...] = jnp.full_like(m_ref, _NEG_BIG)
        l_ref[...] = jnp.zeros_like(l_ref)
        tgt_ref[...] = jnp.zeros_like(tgt_ref)

    # ---- cosine tile: (tb, D) @ (D, tc) on the MXU (bf16 in, f32 accumulate) ----
    s = jnp.dot(xn_ref[...], et_ref[...], preferred_element_type=jnp.float32)  # (tb, tc)
    s = s * inv_ref[...]                       # fold per-class 1/||e|| ((1, tc) broadcast)
    if mask_classes:                           # only emitted when C needed padding
        s = s + bias_ref[...]                  # -1e30 on padded class columns

    # global class ids from a (1, tc) iota (8 vregs, not tb*tc)
    col = ci * tc + lax.broadcasted_iota(jnp.int32, (1, tc), 1)
    label = label_ref[...]                                                   # (tb, 1), -1 = pad

    # target logit: the label column shows up in exactly one C tile per row
    tgt_ref[...] += jnp.sum(jnp.where(col == label, s, 0.0), axis=-1, keepdims=True)

    # online log-sum-exp over the class axis
    m_prev = m_ref[...]
    m_new = jnp.maximum(m_prev, jnp.max(s, axis=-1, keepdims=True))
    p = jnp.exp(s - m_new)
    l_ref[...] = jnp.exp(m_prev - m_new) * l_ref[...] + jnp.sum(p, axis=-1, keepdims=True)
    m_ref[...] = m_new

    # ---- finalize on the last C tile: per-row log_softmax[label] -> partial loss ----
    @pl.when(ci == n_ctiles - 1)
    def _():
        lse = m_ref[...] + jnp.log(l_ref[...])                               # (tb, 1)
        per_example = tgt_ref[...] - lse
        if mask_rows:                                                        # only if B padded
            row = pl.program_id(0) * tb + lax.broadcasted_iota(jnp.int32, (tb, 1), 0)
            per_example = jnp.where(row < batch, per_example, 0.0)
        partial = -jnp.sum(per_example) * inv_batch
        # lane-dense, unmasked store; wrapper reads [:, 0, 0]
        out_ref[...] = jnp.broadcast_to(partial, out_ref.shape)


def gce_loss(x, embedding, label, *, tb=None, tc=None, matmul_dtype=jnp.bfloat16):
    """GCE forward. x: (B, D), embedding: (C, D), label: (B,) int. Returns scalar f32."""
    B, D = x.shape
    C, _ = embedding.shape

    # --- class-table prep (done ONCE, not per B tile) --------------------------
    # Only per-class inverse norms are computed in f32; the raw table is streamed
    # transposed in matmul_dtype so the MXU RHS is lane-dense / transpose-free and
    # the dominant HBM stream is half-width vs f32.
    emb32 = embedding.astype(jnp.float32)
    inv_norm = lax.rsqrt(jnp.maximum(jnp.sum(emb32 * emb32, axis=-1), _EPS_SQ))   # (C,)
    e_T = embedding.astype(matmul_dtype).T                                         # (D, C)

    # D padding keeps the contraction dim MXU-friendly on v6e/v7x (256x256 arrays);
    # zero columns change neither norms nor dot products.
    Dp = D if D <= 256 else _round_up(D, 256)

    # --- tile selection ---------------------------------------------------------
    # tb: arithmetic intensity against the streamed table ~ tb FLOP/byte (bf16);
    #     larger is better until x (f32, double-buffered) + xn cache strain VMEM.
    # tc: streamed class tile; the double-buffered (Dp, tc) slab must fit its share.
    # TODO(synk): on v7x prefer an even number of row tiles (megacore) for large B,
    #             and sweep tb/tc per generation against a bundle dump.
    e_item = jnp.dtype(matmul_dtype).itemsize
    tb_budget = (2 * _TILE_VMEM_BUDGET) // 3
    tc_budget = _TILE_VMEM_BUDGET // 3
    if tb is None:
        tb = min(_round_up(B, 8), 512)
        while tb > 128 and tb * Dp * (2 * 4 + e_item) > tb_budget:
            tb = _round_up(tb // 2, 8)
    if tc is None:
        tc = min(_round_up(C, 128), 1024)
        while tc > 128 and tc * Dp * 2 * e_item > tc_budget:
            tc = _round_up(tc // 2, 128)

    n_btiles = pl.cdiv(B, tb)
    n_ctiles = pl.cdiv(C, tc)
    Bp, Cp = n_btiles * tb, n_ctiles * tc
    mask_rows = Bp != B
    mask_classes = Cp != C

    # --- padding ---------------------------------------------------------------
    label2d = label.reshape(B, 1).astype(jnp.int32)
    if Dp != D:
        x = jnp.pad(x, ((0, 0), (0, Dp - D)))
        e_T = jnp.pad(e_T, ((0, Dp - D), (0, 0)))
    if mask_rows:
        x = jnp.pad(x, ((0, Bp - B), (0, 0)))
        label2d = jnp.pad(label2d, ((0, Bp - B), (0, 0)), constant_values=-1)
    if mask_classes:
        e_T = jnp.pad(e_T, ((0, 0), (0, Cp - C)))
        inv_norm = jnp.pad(inv_norm, (0, Cp - C))
    inv_norm2d = inv_norm.reshape(1, Cp).astype(jnp.float32)
    bias2d = jnp.where(jnp.arange(Cp) < C, 0.0, _NEG_BIG).astype(jnp.float32).reshape(1, Cp)

    kernel = functools.partial(
        _gce_kernel, tb=tb, tc=tc, n_ctiles=n_ctiles, batch=B,
        inv_batch=1.0 / B, mask_classes=mask_classes, mask_rows=mask_rows)

    out = pl.pallas_call(
        kernel,
        out_shape=jax.ShapeDtypeStruct((n_btiles, 8, 128), jnp.float32),
        grid_spec=pltpu.PrefetchScalarGridSpec(
            num_scalar_prefetch=0,
            grid=(n_btiles, n_ctiles),
            in_specs=[
                pl.BlockSpec((tb, Dp), lambda i, j: (i, 0)),   # x rows (reused over C tiles)
                # TODO(synk): add pipeline_mode=pl.Buffered(3) here if xprof shows an
                # exposed DMA bubble at each row-tile boundary.
                pl.BlockSpec((Dp, tc), lambda i, j: (0, j)),   # raw emb^T, streamed over C
                pl.BlockSpec((1, tc), lambda i, j: (0, j)),    # per-class 1/||e||
                pl.BlockSpec((1, tc), lambda i, j: (0, j)),    # class-padding bias
                pl.BlockSpec((tb, 1), lambda i, j: (i, 0)),    # labels
            ],
            out_specs=pl.BlockSpec((1, 8, 128), lambda i, j: (i, 0, 0)),
            scratch_shapes=[
                pltpu.VMEM((tb, Dp), matmul_dtype),   # cached normalized x rows
                pltpu.VMEM((tb, 1), jnp.float32),     # running max  m
                pltpu.VMEM((tb, 1), jnp.float32),     # running sum  l
                pltpu.VMEM((tb, 1), jnp.float32),     # target logit
            ]),
        compiler_params=pltpu.CompilerParams(
            dimension_semantics=("parallel", "arbitrary"),
            vmem_limit_bytes=_VMEM_LIMIT_BYTES),
    )(x, e_T, inv_norm2d, bias2d, label2d)

    # per-row-tile partial losses live at [:, 0, 0]; each is already / B.
    return jnp.sum(out[:, 0, 0])


def _reference(x, embedding, label):
    eps = 1e-12
    x_n = x / jnp.maximum(jnp.linalg.norm(x, axis=-1, keepdims=True), eps)
    e_n = embedding / jnp.maximum(
        jnp.linalg.norm(embedding, axis=-1, keepdims=True), eps)
    cosine = x_n @ e_n.T
    log_sm = jax.nn.log_softmax(cosine, axis=1)
    one_hot = jax.nn.one_hot(label, embedding.shape[0], dtype=jnp.float32)
    return -jnp.mean(jnp.sum(one_hot * log_sm, axis=1))


if __name__ == "__main__":
    key = jax.random.PRNGKey(0)
    batch = 8
    in_features = 32
    num_classes = 16

    k1, k2, k3 = jax.random.split(key, 3)
    # Deterministic "embedding weight" (nn.Embedding default: N(0,1)).
    embedding = jax.random.normal(k1, (num_classes, in_features), dtype=jnp.float32)
    x = jax.random.normal(k2, (batch, in_features), dtype=jnp.float32)
    label = jax.random.randint(k3, (batch,), 0, num_classes, dtype=jnp.int32)

    ref = _reference(x, embedding, label)

    # Default production path: bf16 operands on the MXU (f32 accumulation) — bf16
    # rounding of the cosines means a relaxed tolerance.
    loss_bf16 = gce_loss(x, embedding, label)
    jax.block_until_ready(loss_bf16)
    assert jnp.allclose(loss_bf16, ref, atol=2e-2, rtol=1e-2), (loss_bf16, ref)

    # f32 path: tight numerical check of the kernel structure (online LSE, masking).
    loss_f32 = gce_loss(x, embedding, label, matmul_dtype=jnp.float32)
    jax.block_until_ready(loss_f32)
    assert jnp.allclose(loss_f32, ref, atol=1e-5, rtol=1e-5), (loss_f32, ref)

    print("KERNEL_OK")
</pallas_src>

<mosaic_0001>
module attributes {stable_mosaic.version = 11 : i64} {
  func.func @_gce_kernel(%arg0: i32, %arg1: i32, %arg2: memref<8x32xf32, #tpu.memory_space<vmem>>, %arg3: memref<32x128xbf16, #tpu.memory_space<vmem>>, %arg4: memref<1x128xf32, #tpu.memory_space<vmem>>, %arg5: memref<1x128xf32, #tpu.memory_space<vmem>>, %arg6: memref<8x1xi32, #tpu.memory_space<vmem>>, %arg7: memref<1x8x128xf32, #tpu.memory_space<vmem>>, %arg8: memref<8x32xbf16, #tpu.memory_space<vmem>>, %arg9: memref<8x1xf32, #tpu.memory_space<vmem>>, %arg10: memref<8x1xf32, #tpu.memory_space<vmem>>, %arg11: memref<8x1xf32, #tpu.memory_space<vmem>>) attributes {dimension_semantics = [#tpu.dimension_semantics<parallel>, #tpu.dimension_semantics<arbitrary>], iteration_bounds = array<i64: 1, 1>, scalar_prefetch = 0 : i64, scratch_operands = 4 : i64, tpu.core_type = #tpu.core_type<tc>, window_params = [{transform_indices = @transform_0, window_bounds = array<i64: 8, 32>}, {transform_indices = @transform_1, window_bounds = array<i64: 32, 128>}, {transform_indices = @transform_2, window_bounds = array<i64: 1, 128>}, {transform_indices = @transform_3, window_bounds = array<i64: 1, 128>}, {transform_indices = @transform_4, window_bounds = array<i64: 8, 1>}, {transform_indices = @transform_5, window_bounds = array<i64: 1, 8, 128>}]} {
    %c0_i32 = arith.constant 0 : i32
    %0 = arith.cmpi eq, %arg1, %c0_i32 : i32
    %1 = arith.extui %0 : i1 to i32
    %c0_i32_0 = arith.constant 0 : i32
    %2 = arith.cmpi ne, %1, %c0_i32_0 : i32
    scf.if %2 {
      %c0_28 = arith.constant 0 : index
      %c0_29 = arith.constant 0 : index
      %46 = vector.load %arg2[%c0_28, %c0_29] : memref<8x32xf32, #tpu.memory_space<vmem>>, vector<8x32xf32>
      %47 = arith.mulf %46, %46 : vector<8x32xf32>
      %cst_30 = arith.constant dense<0.000000e+00> : vector<8xf32>
      %48 = vector.multi_reduction <add>, %47, %cst_30 [1] : vector<8x32xf32> to vector<8xf32>
      %49 = vector.shape_cast %48 : vector<8xf32> to vector<8x1xf32>
      %cst_31 = arith.constant 1.000000e-24 : f32
      %50 = vector.broadcast %cst_31 : f32 to vector<8x1xf32>
      %51 = arith.maximumf %49, %50 : vector<8x1xf32>
      %52 = math.rsqrt %51 : vector<8x1xf32>
      %53 = vector.broadcast %52 : vector<8x1xf32> to vector<8x32xf32>
      %54 = arith.mulf %46, %53 : vector<8x32xf32>
      %55 = arith.truncf %54 : vector<8x32xf32> to vector<8x32xbf16>
      %c0_32 = arith.constant 0 : index
      %c0_33 = arith.constant 0 : index
      %56 = vector.load %arg8[%c0_32, %c0_33] : memref<8x32xbf16, #tpu.memory_space<vmem>>, vector<8x32xbf16>
      tpu.vector_store %arg8[%c0_32, %c0_33], %55 {strides = array<i32>} : memref<8x32xbf16, #tpu.memory_space<vmem>>, vector<8x32xbf16>,
      %cst_34 = arith.constant -1.000000e+30 : f32
      %57 = vector.broadcast %cst_34 : f32 to vector<8x1xf32>
      %c0_35 = arith.constant 0 : index
      %c0_36 = arith.constant 0 : index
      %58 = vector.load %arg9[%c0_35, %c0_36] : memref<8x1xf32, #tpu.memory_space<vmem>>, vector<8x1xf32>
      tpu.vector_store %arg9[%c0_35, %c0_36], %57 {strides = array<i32>} : memref<8x1xf32, #tpu.memory_space<vmem>>, vector<8x1xf32>,
      %cst_37 = arith.constant 0.000000e+00 : f32
      %59 = vector.broadcast %cst_37 : f32 to vector<8x1xf32>
      %c0_38 = arith.constant 0 : index
      %c0_39 = arith.constant 0 : index
      %60 = vector.load %arg10[%c0_38, %c0_39] : memref<8x1xf32, #tpu.memory_space<vmem>>, vector<8x1xf32>
      tpu.vector_store %arg10[%c0_38, %c0_39], %59 {strides = array<i32>} : memref<8x1xf32, #tpu.memory_space<vmem>>, vector<8x1xf32>,
      %cst_40 = arith.constant 0.000000e+00 : f32
      %61 = vector.broadcast %cst_40 : f32 to vector<8x1xf32>
      %c0_41 = arith.constant 0 : index
      %c0_42 = arith.constant 0 : index
      %62 = vector.load %arg11[%c0_41, %c0_42] : memref<8x1xf32, #tpu.memory_space<vmem>>, vector<8x1xf32>
      tpu.vector_store %arg11[%c0_41, %c0_42], %61 {strides = array<i32>} : memref<8x1xf32, #tpu.memory_space<vmem>>, vector<8x1xf32>,
    } else {
    }
    %c0 = arith.constant 0 : index
    %c0_1 = arith.constant 0 : index
    %3 = vector.load %arg8[%c0, %c0_1] : memref<8x32xbf16, #tpu.memory_space<vmem>>, vector<8x32xbf16>
    %c0_2 = arith.constant 0 : index
    %c0_3 = arith.constant 0 : index
    %4 = vector.load %arg3[%c0_2, %c0_3] : memref<32x128xbf16, #tpu.memory_space<vmem>>, vector<32x128xbf16>
    %cst = arith.constant dense<0.000000e+00> : vector<8x128xf32>
    %5 = tpu.matmul %3, %4, %cst {dimension_numbers = #tpu.dot_dimension_numbers<[1], [0], [0], [1], [0, 0, 1, 1], [], []>} : vector<8x32xbf16>, vector<32x128xbf16>, vector<8x128xf32> -> vector<8x128xf32>
    %c0_4 = arith.constant 0 : index
    %c0_5 = arith.constant 0 : index
    %6 = vector.load %arg4[%c0_4, %c0_5] : memref<1x128xf32, #tpu.memory_space<vmem>>, vector<1x128xf32>
    %7 = vector.broadcast %6 : vector<1x128xf32> to vector<8x128xf32>
    %8 = arith.mulf %5, %7 : vector<8x128xf32>
    %c0_6 = arith.constant 0 : index
    %c0_7 = arith.constant 0 : index
    %9 = vector.load %arg5[%c0_6, %c0_7] : memref<1x128xf32, #tpu.memory_space<vmem>>, vector<1x128xf32>
    %10 = vector.broadcast %9 : vector<1x128xf32> to vector<8x128xf32>
    %11 = arith.addf %8, %10 : vector<8x128xf32>
    %c128_i32 = arith.constant 128 : i32
    %12 = arith.muli %arg1, %c128_i32 : i32
    %13 = tpu.iota {dimensions = array<i32: 1>} : vector<1x128xi32>
    %14 = vector.broadcast %12 : i32 to vector<1x128xi32>
    %15 = arith.addi %14, %13 : vector<1x128xi32>
    %c0_8 = arith.constant 0 : index
    %c0_9 = arith.constant 0 : index
    %16 = vector.load %arg6[%c0_8, %c0_9] : memref<8x1xi32, #tpu.memory_space<vmem>>, vector<8x1xi32>
    %c0_10 = arith.constant 0 : index
    %c0_11 = arith.constant 0 : index
    %17 = vector.load %arg11[%c0_10, %c0_11] : memref<8x1xf32, #tpu.memory_space<vmem>>, vector<8x1xf32>
    %18 = vector.broadcast %15 : vector<1x128xi32> to vector<8x128xi32>
    %19 = vector.broadcast %16 : vector<8x1xi32> to vector<8x128xi32>
    %20 = arith.cmpi eq, %18, %19 : vector<8x128xi32>
    %cst_12 = arith.constant 0.000000e+00 : f32
    %21 = vector.broadcast %cst_12 : f32 to vector<8x128xf32>
    %22 = arith.select %20, %11, %21 : vector<8x128xi1>, vector<8x128xf32>
    %cst_13 = arith.constant dense<0.000000e+00> : vector<8xf32>
    %23 = vector.multi_reduction <add>, %22, %cst_13 [1] : vector<8x128xf32> to vector<8xf32>
    %24 = vector.shape_cast %23 : vector<8xf32> to vector<8x1xf32>
    %25 = arith.addf %17, %24 : vector<8x1xf32>
    %c0_14 = arith.constant 0 : index
    %c0_15 = arith.constant 0 : index
    %26 = vector.load %arg11[%c0_14, %c0_15] : memref<8x1xf32, #tpu.memory_space<vmem>>, vector<8x1xf32>
    tpu.vector_store %arg11[%c0_14, %c0_15], %25 {strides = array<i32>} : memref<8x1xf32, #tpu.memory_space<vmem>>, vector<8x1xf32>,
    %c0_16 = arith.constant 0 : index
    %c0_17 = arith.constant 0 : index
    %27 = vector.load %arg9[%c0_16, %c0_17] : memref<8x1xf32, #tpu.memory_space<vmem>>, vector<8x1xf32>
    %cst_18 = arith.constant dense<0xFF800000> : vector<8xf32>
    %28 = vector.multi_reduction <maximumf>, %11, %cst_18 [1] : vector<8x128xf32> to vector<8xf32>
    %29 = vector.shape_cast %28 : vector<8xf32> to vector<8x1xf32>
    %30 = arith.maximumf %27, %29 : vector<8x1xf32>
    %31 = vector.broadcast %30 : vector<8x1xf32> to vector<8x128xf32>
    %32 = arith.subf %11, %31 : vector<8x128xf32>
    %33 = math.exp %32 : vector<8x128xf32>
    %34 = arith.subf %27, %30 : vector<8x1xf32>
    %35 = math.exp %34 : vector<8x1xf32>
    %c0_19 = arith.constant 0 : index
    %c0_20 = arith.constant 0 : index
    %36 = vector.load %arg10[%c0_19, %c0_20] : memref<8x1xf32, #tpu.memory_space<vmem>>, vector<8x1xf32>
    %37 = arith.mulf %35, %36 : vector<8x1xf32>
    %cst_21 = arith.constant dense<0.000000e+00> : vector<8xf32>
    %38 = vector.multi_reduction <add>, %33, %cst_21 [1] : vector<8x128xf32> to vector<8xf32>
    %39 = vector.shape_cast %38 : vector<8xf32> to vector<8x1xf32>
    %40 = arith.addf %37, %39 : vector<8x1xf32>
    %c0_22 = arith.constant 0 : index
    %c0_23 = arith.constant 0 : index
    %41 = vector.load %arg10[%c0_22, %c0_23] : memref<8x1xf32, #tpu.memory_space<vmem>>, vector<8x1xf32>
    tpu.vector_store %arg10[%c0_22, %c0_23], %40 {strides = array<i32>} : memref<8x1xf32, #tpu.memory_space<vmem>>, vector<8x1xf32>,
    %c0_24 = arith.constant 0 : index
    %c0_25 = arith.constant 0 : index
    %42 = vector.load %arg9[%c0_24, %c0_25] : memref<8x1xf32, #tpu.memory_space<vmem>>, vector<8x1xf32>
    tpu.vector_store %arg9[%c0_24, %c0_25], %30 {strides = array<i32>} : memref<8x1xf32, #tpu.memory_space<vmem>>, vector<8x1xf32>,
    %c0_i32_26 = arith.constant 0 : i32
    %43 = arith.cmpi eq, %arg1, %c0_i32_26 : i32
    %44 = arith.extui %43 : i1 to i32
    %c0_i32_27 = arith.constant 0 : i32
    %45 = arith.cmpi ne, %44, %c0_i32_27 : i32
    scf.if %45 {
      %c0_28 = arith.constant 0 : index
      %c0_29 = arith.constant 0 : index
      %46 = vector.load %arg9[%c0_28, %c0_29] : memref<8x1xf32, #tpu.memory_space<vmem>>, vector<8x1xf32>
      %c0_30 = arith.constant 0 : index
      %c0_31 = arith.constant 0 : index
      %47 = vector.load %arg10[%c0_30, %c0_31] : memref<8x1xf32, #tpu.memory_space<vmem>>, vector<8x1xf32>
      %48 = math.log %47 : vector<8x1xf32>
      %49 = arith.addf %46, %48 : vector<8x1xf32>
      %c0_32 = arith.constant 0 : index
      %c0_33 = arith.constant 0 : index
      %50 = vector.load %arg11[%c0_32, %c0_33] : memref<8x1xf32, #tpu.memory_space<vmem>>, vector<8x1xf32>
      %51 = arith.subf %50, %49 : vector<8x1xf32>
      %52 = vector.shape_cast %51 : vector<8x1xf32> to vector<1x8x1xf32>
      %cst_34 = arith.constant dense<0.000000e+00> : vector<1xf32>
      %53 = vector.multi_reduction <add>, %52, %cst_34 [1, 2] : vector<1x8x1xf32> to vector<1xf32>
      %54 = vector.shape_cast %53 : vector<1xf32> to vector<1x1x1xf32>
      %55 = vector.extract %54[0, 0, 0] : f32 from vector<1x1x1xf32>
      %cst_35 = arith.constant 0.000000e+00 : f32
      %56 = arith.subf %cst_35, %55 : f32
      %cst_36 = arith.constant 1.250000e-01 : f32
      %57 = arith.mulf %56, %cst_36 : f32
      %58 = vector.broadcast %57 : f32 to vector<1x8x128xf32>
      %c0_37 = arith.constant 0 : index
      %c0_38 = arith.constant 0 : index
      %c0_39 = arith.constant 0 : index
      %59 = vector.load %arg7[%c0_37, %c0_38, %c0_39] : memref<1x8x128xf32, #tpu.memory_space<vmem>>, vector<1x8x128xf32>
      tpu.vector_store %arg7[%c0_37, %c0_38, %c0_39], %58 {strides = array<i32>} : memref<1x8x128xf32, #tpu.memory_space<vmem>>, vector<1x8x128xf32>,
    } else {
    }
    return
  }
  func.func @transform_0(%arg0: i32, %arg1: i32) -> (i32, i32) {
    %c0_i32 = arith.constant 0 : i32
    %c0_i32_0 = arith.constant 0 : i32
    return %arg0, %c0_i32 : i32, i32
  }
  func.func @transform_1(%arg0: i32, %arg1: i32) -> (i32, i32) {
    %c0_i32 = arith.constant 0 : i32
    %c0_i32_0 = arith.constant 0 : i32
    return %c0_i32, %arg1 : i32, i32
  }
  func.func @transform_2(%arg0: i32, %arg1: i32) -> (i32, i32) {
    %c0_i32 = arith.constant 0 : i32
    %c0_i32_0 = arith.constant 0 : i32
    return %c0_i32, %arg1 : i32, i32
  }
  func.func @transform_3(%arg0: i32, %arg1: i32) -> (i32, i32) {
    %c0_i32 = arith.constant 0 : i32
    %c0_i32_0 = arith.constant 0 : i32
    return %c0_i32, %arg1 : i32, i32
  }
  func.func @transform_4(%arg0: i32, %arg1: i32) -> (i32, i32) {
    %c0_i32 = arith.constant 0 : i32
    %c0_i32_0 = arith.constant 0 : i32
    return %arg0, %c0_i32 : i32, i32
  }
  func.func @transform_5(%arg0: i32, %arg1: i32) -> (i32, i32, i32) {
    %c0_i32 = arith.constant 0 : i32
    %c0_i32_0 = arith.constant 0 : i32
    %c0_i32_1 = arith.constant 0 : i32
    return %arg0, %c0_i32, %c0_i32_0 : i32, i32, i32
  }
}

</mosaic_0001>

<llo_original>
// kernel: tpu_custom_call.1
$region0: #{tpu_custom_call.1}
  #allocation0 [shape = 'u32[]', space=smem, size = 0x4, offset = 0x4, fixed_abs, tag = 'smem constant byte address 0x4 - core index']
  #allocation1 [shape = 'u32[72,128]{1,0:T(1,128)}', space=vmem, size = 0x9000, scoped, tag = 'internal scratch']
  #allocation2 [shape = 'bf16[8,32]{1,0:T(8,128)(2,1)}', space=vmem, size = 0x800, scoped, tag = 'scratch operand']
  #allocation3 [shape = 'f32[8,1]{1,0:T(8,128)}', space=vmem, size = 0x1000, scoped, tag = 'scratch operand']
  #allocation4 [shape = 'f32[8,1]{1,0:T(8,128)}', space=vmem, size = 0x1000, scoped, tag = 'scratch operand']
  #allocation5 [shape = 'f32[8,1]{1,0:T(8,128)}', space=vmem, size = 0x1000, scoped, tag = 'scratch operand']
  %s0 = inlined_call_operand.vmem [shape: f32[8,32], index: 0, kind: input, shape index: {}]
  %s1 = inlined_call_operand.hbm [shape: bf16[32,128], index: 1, kind: input, shape index: {}]
  %s2 = inlined_call_operand.vmem [shape: f32[1,128], index: 2, kind: input, shape index: {}]
  %s3 = inlined_call_operand.vmem [shape: f32[1,128], index: 3, kind: input, shape index: {}]
  %s4 = inlined_call_operand.vmem [shape: s32[8,1], index: 4, kind: input, shape index: {}]
  %s5 = inlined_call_operand.hbm [shape: f32[1,8,128], index: 5, kind: output, shape index: {}]
  %s6 = sld [smem:[#allocation0]]
  $region42: #{tpu_custom_call.1} parent=0
    _
  %s8 = ssub.s32 1, %s6
  %s9 = scalar_select 0, %s8, %s6
  $region1: #{tpu_custom_call.1} parent=0
    #allocation6 [shape = 'u8[8192]{0}', space=vmem, size = 0x2000, scoped, tag = 'input window, operand 1, single buffered']
    #allocation7 [shape = 's32[1]{0}', space=sflag, size = 0x4, scoped, tag = 'scoped memory for tpu_custom_call.1']
    #allocation8 [shape = 's32[1]{0}', space=sflag, size = 0x4, scoped, tag = 'scoped memory for tpu_custom_call.1']
    #allocation9 [shape = 'u8[4096]{0}', space=vmem, size = 0x1000, scoped, tag = 'output window, operand 0, single buffered']
    %10 = vsyncpa [#allocation7], 0
    %11 = vsyncpa [#allocation8], 0
    // Predicated region
    $region2: #{tpu_custom_call.1} parent=1 // pred_check
      _
    $region3: #{tpu_custom_call.1} parent=1 // pred_check_branch
      %13 = sbr.rel (0) target = $region5
    $region4: #{tpu_custom_call.1} parent=1 // pred_region
      _
    $region5: #{tpu_custom_call.1} parent=1 // pred_fallthru
      _
    // Predicated region
    $region6: #{tpu_custom_call.1} parent=1 // pred_check
      _
    $region7: #{tpu_custom_call.1} parent=1 // pred_check_branch
      %15 = sbr.rel (0) target = $region9
    $region8: #{tpu_custom_call.1} parent=1 // pred_region
      %17 = vsyncadd [#allocation7], 0
      %s18 = sshll.u32 %s1, 4
      %s19 = int_to_ptr.hbm [resolvable:$true] %s18
      %s20 = sshll.u32 [#allocation6], 4
      %s21 = int_to_ptr.vmem [resolvable:$true] %s20
      %26 = dma.hbm_to_vmem [thread:$0]  %s19, 256, %s21, [#allocation7], 64, 64, 4
    $region9: #{tpu_custom_call.1} parent=1 // pred_fallthru
      _
    // Predicated region
    $region10: #{tpu_custom_call.1} parent=1 // pred_check
      _
    $region11: #{tpu_custom_call.1} parent=1 // pred_check_branch
      %28 = sbr.rel (0) target = $region13
    $region12: #{tpu_custom_call.1} parent=1 // pred_region
      _
    $region13: #{tpu_custom_call.1} parent=1 // pred_fallthru
      _
    // Predicated region
    $region14: #{tpu_custom_call.1} parent=1 // pred_check
      _
    $region15: #{tpu_custom_call.1} parent=1 // pred_check_branch
      %30 = sbr.rel (0) target = $region17
    $region16: #{tpu_custom_call.1} parent=1 // pred_region
      _
    $region17: #{tpu_custom_call.1} parent=1 // pred_fallthru
      _
    // Predicated region
    $region18: #{tpu_custom_call.1} parent=1 // pred_check
      _
    $region19: #{tpu_custom_call.1} parent=1 // pred_check_branch
      %32 = sbr.rel (0) target = $region21
    $region20: #{tpu_custom_call.1} parent=1 // pred_region
      _
    $region21: #{tpu_custom_call.1} parent=1 // pred_fallthru
      _
    // Predicated region
    $region22: #{tpu_custom_call.1} parent=1 // pred_check
      _
    $region23: #{tpu_custom_call.1} parent=1 // pred_check_branch
      %34 = sbr.rel (0) target = $region25
    $region24: #{tpu_custom_call.1} parent=1 // pred_region
      %36 = dma.done [#allocation7], 256
    $region25: #{tpu_custom_call.1} parent=1 // pred_fallthru
      _
    %p38 = scmp.eq.s32.totalorder 0, 0
    // Predicated region
    $region26: #{tpu_custom_call.1} parent=1 // pred_check
      %p39 = pneg %p38
    $region27: #{tpu_custom_call.1} parent=1 // pred_check_branch
      %41 = sbr.rel (%p39) target = $region29
    $region28: #{tpu_custom_call.1} parent=1 // pred_region
      %v42 = vld [vmem:[%s0] sm:$0xff]
      %v43 = vmul.f32 %v42, %v42
      %vm44 = vcmask 261120
      %v45 = vsel %vm44, %v43, 0.0
      %46 = vadd.xlane.f32.xlu0 %v45
      %v47 = vpop.xlane.xlu0 %46
      %v48 = vmax.f32 %v47, 1e-24
      %v49 = vrsqrt.pop %v48
      %v50 = vmul.f32 %v49, %v48
      %v51 = vmul.f32 %v50, %v49
      %v52 = vmul.f32 0.5, %v51
      %v53 = vsub.f32 1.5, %v52
      %v54 = vmul.f32 %v49, %v53
      %vm55 = vweird.f32 %v48
      %vm56 = vweird.f32 %v49
      %vm57 = vmor %vm55, %vm56
      %v58 = vsel %vm57, %v49, %v54
      %v59 = vmul.f32 %v42, %v58
      %v60 = vpack.c.bf16 %v59, %v59
      %vm61 = vcmask 257024
      %62 = vst.msk [vmem:[#allocation2] sm:$0xf] %vm61, %v60
      %vm63 = vcmask 7168
      %64 = vst.msk [vmem:[#allocation3] sm:$0xff] %vm63, -1e+30
      %65 = vst.msk [vmem:[#allocation4] sm:$0xff] %vm63, 0.0
      %66 = vst.msk [vmem:[#allocation5] sm:$0xff] %vm63, 0.0
    $region29: #{tpu_custom_call.1} parent=1 // pred_fallthru
      _
    %v67 = vld [vmem:[#allocation2] sm:$0xf]
    %v68 = vld [vmem:[#allocation6] sm:$0xf]
    %v69 = vld [vmem:[#allocation6 + $0x4] sm:$0xf]
    %v70 = vld [vmem:[#allocation6 + $0x8] sm:$0xf]
    %v71 = vld [vmem:[#allocation6 + $0xc] sm:$0xf]
    %v76 = vunpack.c.l.b16 %v68
    %v77 = vunpack.c.l.b16 %v69
    %v78 = vunpack.c.l.b16 %v70
    %v79 = vunpack.c.l.b16 %v71
    %v80 = vpack.c.b16 %v77, %v76
    %v81 = vpack.c.b16 %v79, %v78
    %vm84 = vcmask 261120
    %v86 = vsel %vm84, %v67, 0
    %88 = vmatpush.bf16.msra.mxu0 0
    %89 = vmatpush.bf16.msra.mxu0 0
    %90 = vmatpush.bf16.msra.mxu0 0
    %91 = vmatpush.bf16.msra.mxu0 0
    %92 = vmatpush.bf16.msra.mxu0 0
    %93 = vmatpush.bf16.msra.mxu0 0
    %94 = vmatpush.bf16.msra.mxu0 %v81
    %95 = vmatpush.bf16.msra.mxu0 %v80
    %96 = vmatmul.bf16.gmra.mxu0 %v86
    %v97 = vpop.f32.mrf.mxu0
    %v98 = vadd.f32 0.0, %v97
    %v99 = vpop.f32.mrf.mxu0
    %100 = vdwg.mxu0
    %v101 = vld [vmem:[%s2] sm:$0x1]
    %v103 = vperm.slane %v101, 0
    %v105 = vmul.f32 %v98, %v103
    %v106 = vld [vmem:[%s3] sm:$0x1]
    %v108 = vperm.slane %v106, 0
    %v110 = vadd.f32 %v105, %v108
    %s111 = smul.u32 0, 128
    %v112 = vlaneseq
    %v113 = vand.u32 %v112, 127
    %v114 = vstv %s111
    %v115 = vadd.s32 %v114, %v113
    %v116 = vld [vmem:[%s4] sm:$0xff]
    %v117 = vld [vmem:[#allocation5] sm:$0xff]
    %118 = vset.pattern.permute.xlu0 0
    %119 = vperm.xlu0 %118, %v116
    %v120 = vpop.permute.xlu0 %119
    %vm121 = vcmp.eq.s32.totalorder %v115, %v120
    %v122 = vsel %vm121, %v110, 0.0
    %123 = vadd.xlane.f32.xlu0 %v122
    %v124 = vpop.xlane.xlu0 %123
    %v125 = vadd.f32 %v117, %v124
    %vm126 = vcmask 7168
    %127 = vst.msk [vmem:[#allocation5] sm:$0xff] %vm126, %v125
    %v128 = vld [vmem:[#allocation3] sm:$0xff]
    %129 = vmax.xlane.f32.xlu0 %v110
    %v130 = vpop.xlane.xlu0 %129
    %v131 = vmax.f32 %v128, %v130
    %133 = vset.pattern.permute.xlu0 0
    %134 = vperm.xlu0 %133, %v131
    %v135 = vpop.permute.xlu0 %134
    %v137 = vsub.f32 %v110, %v135
    %v138 = vmul.f32 %v137, 1.442695
    %v139 = vpow.pop %v138
    %v140 = vsub.f32 %v128, %v131
    %v141 = vmul.f32 %v140, 1.442695
    %v142 = vpow.pop %v141
    %v143 = vld [vmem:[#allocation4] sm:$0xff]
    %v144 = vmul.f32 %v142, %v143
    %145 = vadd.xlane.f32.xlu0 %v139
    %v146 = vpop.xlane.xlu0 %145
    %v147 = vadd.f32 %v144, %v146
    %148 = vst.msk [vmem:[#allocation4] sm:$0xff] %vm126, %v147
    %149 = vst.msk [vmem:[#allocation3] sm:$0xff] %vm126, %v131
    // Predicated region
    $region30: #{tpu_custom_call.1} parent=1 // pred_check
      %p150 = pneg %p38
    $region31: #{tpu_custom_call.1} parent=1 // pred_check_branch
      %152 = sbr.rel (%p150) target = $region33
    $region32: #{tpu_custom_call.1} parent=1 // pred_region
      %v153 = vld [vmem:[#allocation3] sm:$0xff]
      %v154 = vld [vmem:[#allocation4] sm:$0xff]
      %v155 = vlog2.pop %v154
      %v156 = vmul.f32 %v155, 0.6931472
      %v157 = vadd.f32 %v153, %v156
      %v158 = vld [vmem:[#allocation5] sm:$0xff]
      %v159 = vsub.f32 %v158, %v157
      %v160 = vsel %vm126, %v159, 0.0
      %161 = vadd.xlane.f32.xlu0 %v160
      %v162 = vpop.xlane.xlu0 %161
      %v163 = vrot.slane %v162, 4
      %v164 = vadd.f32 %v162, %v163
      %v165 = vrot.slane %v164, 2
      %v166 = vadd.f32 %v164, %v165
      %v167 = vrot.slane %v166, 1
      %v168 = vadd.f32 %v166, %v167
      %s169 = vtos %v168
      %s170 = ssub.f32 0.0, %s169
      %s171 = smul.f32 %s170, 0.125
      %v172 = vstv %s171
      %173 = vst [vmem:[#allocation9] sm:$0xff] %v172
    $region33: #{tpu_custom_call.1} parent=1 // pred_fallthru
      _
    // Predicated region
    $region34: #{tpu_custom_call.1} parent=1 // pred_check
      _
    $region35: #{tpu_custom_call.1} parent=1 // pred_check_branch
      %175 = sbr.rel (0) target = $region37
    $region36: #{tpu_custom_call.1} parent=1 // pred_region
      %177 = vsyncadd [#allocation8], 0
      %s179 = sshll.u32 [#allocation9], 4
      %s180 = int_to_ptr.vmem [resolvable:$true] %s179
      %s181 = sshll.u32 %s5, 4
      %s182 = int_to_ptr.hbm [resolvable:$true] %s181
      %184 = dma.vmem_to_hbm [thread:$0]  %s180, 128, %s182, [#allocation8]
    $region37: #{tpu_custom_call.1} parent=1 // pred_fallthru
      _
    // Predicated region
    $region38: #{tpu_custom_call.1} parent=1 // pred_check
      _
    $region39: #{tpu_custom_call.1} parent=1 // pred_check_branch
      %186 = sbr.rel (0) target = $region41
    $region40: #{tpu_custom_call.1} parent=1 // pred_region
      %188 = dma.done [#allocation8], 128
    $region41: #{tpu_custom_call.1} parent=1 // pred_fallthru
      _
    %189 = vsyncpa [#allocation7], 1
    %190 = vsyncpa [#allocation8], 1

</llo_original>
